<compile_context>
chip_gen: v7x
topology: tpu7x:2x2x1
jax: 0.10.0
libtpu: 0.0.40
codegen_flags: <defaults>
</compile_context>

<pallas_src>
import math

import jax
import jax.numpy as jnp
from jax import lax
from jax.experimental import pallas as pl
from jax.experimental.pallas import tpu as pltpu

# ---- LocalFedCapsNet config (small, consistent with the module) ----
CONV1_CHANNELS = 4        # conv1_Channel
OUTPUT_CAPS = 8           # primary_channel
OUTPUT_DIM = 4            # capsule_dimention
KERNEL_SIZE = 3           # conv1 kernel size
PC_KERNEL = 3             # primaryCaps_filter_size
PC_STRIDE = 2
N_CLASSES = 10
DIGIT_DIM = 16
ROUTING_ITERS = 3
C_OUT = OUTPUT_CAPS * OUTPUT_DIM          # primary conv output channels (32)


def _round_up(v, m):
    return ((v + m - 1) // m) * m


def _tile_m(m, max_tm=2048, min_steps=2):
    """Lane-dense tile along the (n, h_out, w_out) axis.

    Pick the largest tile (<= max_tm; sweep 512-2048 for big batches) that still
    leaves >= min_steps grid steps so both v7x TensorCores get work."""
    half = -(-m // min_steps)                       # ceil(m / min_steps)
    tm = max(128, min(max_tm, _round_up(half, 128)))
    steps = max(min_steps, -(-m // tm))
    return tm, steps * tm


# --------------------------- Pallas kernels ---------------------------

def _conv_relu_kernel(w_ref, p_ref, out_ref):
    """out^T block: relu((C1, K) @ (K, TM)) -> (C1, TM), f32 accumulation."""
    acc = jnp.dot(w_ref[...], p_ref[...], preferred_element_type=jnp.float32)
    out_ref[...] = jnp.maximum(acc, 0.0)


def _primary_caps_kernel(w_ref, p_ref, mask_ref, out_ref):
    """out^T block: squash((C_OUT, K) @ (K, TM)) -> (C_OUT, TM)."""
    acc = jnp.dot(w_ref[...], p_ref[...], preferred_element_type=jnp.float32)
    # Per-capsule squared length via the precomputed block-diagonal 0/1 mask,
    # applied from the LEFT so the big M axis stays on lanes.
    lengths2 = jnp.dot(mask_ref[...], acc * acc,
                       preferred_element_type=jnp.float32)
    # squash scale: L2/(1+L2)/L == L/(1+L2); sqrt + approx reciprocal go to the
    # otherwise-idle EUP slot and there is no divide-by-zero for padded columns.
    scale = jnp.sqrt(lengths2) * pl.reciprocal(1.0 + lengths2, approx=True)
    out_ref[...] = acc * scale


# ----------------------- conv -> matmul lowering -----------------------

def _im2col_nchw(x, k, stride):
    """Patch extraction (pure indexing; fused by XLA under jit).

    Rows ordered (n, h_out, w_out); columns ordered (c_in, kh, kw) to match the
    PyTorch OIHW conv weight flattened along its trailing axes."""
    n, c, h, w = x.shape
    ho = (h - k) // stride + 1
    wo = (w - k) // stride + 1
    rows = []
    for kh in range(k):
        cols = []
        for kw in range(k):
            cols.append(x[:, :, kh:kh + stride * ho:stride,
                          kw:kw + stride * wo:stride])
        rows.append(jnp.stack(cols, axis=-1))          # (N,C,Ho,Wo,kW)
    patches = jnp.stack(rows, axis=-2)                  # (N,C,Ho,Wo,kH,kW)
    patches = patches.transpose(0, 2, 3, 1, 4, 5)       # (N,Ho,Wo,C,kH,kW)
    # TODO(synk): for large H/W/N, build patches in-kernel from a strided VMEM
    # block instead of materializing the im2col tensor in HBM.
    return patches.reshape(n * ho * wo, c * k * k), ho, wo


def _conv_as_matmul_t(x_nchw, w_oihw, bias, stride, kernel_body, extra=()):
    """Lower a VALID conv to out^T = [W | b] @ [patches^T ; 1] (lane-dense).

    Operands should already be in the MXU dtype (bf16). Returns the f32
    (C_out, N*Ho*Wo) transposed result plus (N, Ho, Wo)."""
    co = w_oihw.shape[0]
    k = w_oihw.shape[2]
    patches, ho, wo = _im2col_nchw(x_nchw, k, stride)    # (M, K)
    m, kdim = patches.shape
    n = x_nchw.shape[0]

    # Fold the bias in as a ones-row / bias-column (one less input, no add).
    w_aug = jnp.concatenate([w_oihw.reshape(co, kdim), bias.reshape(co, 1)],
                            axis=1)                      # (co, K+1)
    p_t = jnp.concatenate([patches.T, jnp.ones((1, m), patches.dtype)],
                          axis=0)                        # (K+1, M)

    # Pad the contraction dim only to a sublane multiple (NOT 128 -- that would
    # inflate the dominant HBM stream) and M to lane-dense tiles.
    kpad = _round_up(kdim + 1, 8)
    tm, m_pad = _tile_m(m)
    w_aug = jnp.pad(w_aug, ((0, 0), (0, kpad - kdim - 1)))
    p_t = jnp.pad(p_t, ((0, kpad - kdim - 1), (0, m_pad - m)))

    in_specs = [pl.BlockSpec((co, kpad), lambda i: (0, 0)),
                pl.BlockSpec((kpad, tm), lambda i: (0, i))]
    operands = [w_aug, p_t]
    for const in extra:                                  # e.g. hoisted group mask
        in_specs.append(pl.BlockSpec(const.shape, lambda i: (0, 0)))
        operands.append(const)

    out_t = pl.pallas_call(
        kernel_body,
        out_shape=jax.ShapeDtypeStruct((co, m_pad), jnp.float32),
        grid=(m_pad // tm,),
        in_specs=in_specs,
        out_specs=pl.BlockSpec((co, tm), lambda i: (0, i)),
        compiler_params=pltpu.CompilerParams(
            dimension_semantics=("parallel",)),
    )(*operands)
    return out_t[:, :m], (n, ho, wo)


# --------------------------- layer wrappers ---------------------------

def conv1_relu_pallas(x_bf16, w_bf16, b_bf16):
    out_t, (n, ho, wo) = _conv_as_matmul_t(x_bf16, w_bf16, b_bf16, stride=1,
                                           kernel_body=_conv_relu_kernel)
    return out_t.reshape(CONV1_CHANNELS, n, ho, wo).transpose(1, 0, 2, 3)


def primary_caps_pallas(h_bf16, w_bf16, b_bf16):
    # Hoisted out of the kernel: block-diagonal 0/1 mask, 4x4 ones blocks.
    g = jnp.arange(C_OUT, dtype=jnp.int32) // OUTPUT_DIM
    group_mask = (g[:, None] == g[None, :]).astype(jnp.float32)
    out_t, (n, ho, wo) = _conv_as_matmul_t(
        h_bf16, w_bf16, b_bf16, stride=PC_STRIDE,
        kernel_body=_primary_caps_kernel, extra=(group_mask,))
    # (C_OUT, N*Ho*Wo) -> (N, caps*Ho*Wo, dim): pure index shuffling (glue).
    out = out_t.reshape(OUTPUT_CAPS, OUTPUT_DIM, n, ho, wo)
    return out.transpose(2, 0, 3, 4, 1).reshape(n, OUTPUT_CAPS * ho * wo,
                                                OUTPUT_DIM)


def _squash(x):
    l2 = jnp.sum(jnp.square(x), axis=-1, keepdims=True)
    return x * (jnp.sqrt(l2) / (1.0 + l2))     # == l2/(1+l2)/l, no 0-div path


def digitcaps_routing(caps_output, dc_weights, b_logits, n_iterations):
    # TODO(synk): digitCaps per-capsule matmuls + agreement routing are tiny
    # data-dependent iterative ops; left to fused XLA (per-step work is far
    # below Pallas grid-step overhead at these sizes).
    u = jnp.einsum('bid,idk->bik', caps_output, dc_weights)
    bsz, icaps, _ = u.shape
    u = u.reshape(bsz, icaps, N_CLASSES, DIGIT_DIM)
    c = jax.nn.softmax(b_logits, axis=1)
    s = jnp.sum(c[None, :, :, None] * u, axis=1)
    v = _squash(s)
    bb = jnp.broadcast_to(b_logits, (bsz, icaps, N_CLASSES))
    for _ in range(n_iterations):
        bb = bb + jnp.sum(u * v[:, None, :, :], axis=-1)
        c = jax.nn.softmax(bb, axis=-1)
        s = jnp.sum(c[..., None] * u, axis=1)
        v = _squash(s)
    return v, c


@jax.jit
def local_fedcaps_forward(x, params):
    w1, b1, wp, bp, wd, b_route = params
    to16 = lambda a: a.astype(jnp.bfloat16)   # bf16 MXU operands, f32 accum
    h = conv1_relu_pallas(to16(x), to16(w1), to16(b1))          # (N,C1,26,26)
    caps = primary_caps_pallas(to16(h), to16(wp), to16(bp))     # (N,caps,4)
    v, _c = digitcaps_routing(caps, wd, b_route, ROUTING_ITERS)
    probs = jnp.sqrt(jnp.sum(jnp.square(v), axis=2))
    return v, probs, caps


@jax.jit
def reference_forward(x, params):
    """Pure-JAX/XLA reproduction of the PyTorch forward (same bf16 operand
    precision as the kernel path, f32 accumulation, exact squash)."""
    w1, b1, wp, bp, wd, b_route = params
    to16 = lambda a: a.astype(jnp.bfloat16)
    h = lax.conv_general_dilated(
        to16(x), to16(w1), (1, 1), 'VALID',
        dimension_numbers=('NCHW', 'OIHW', 'NCHW'),
        preferred_element_type=jnp.float32)
    h = jnp.maximum(h + to16(b1).astype(jnp.float32).reshape(1, -1, 1, 1), 0.0)
    pc = lax.conv_general_dilated(
        to16(h), to16(wp), (PC_STRIDE, PC_STRIDE), 'VALID',
        dimension_numbers=('NCHW', 'OIHW', 'NCHW'),
        preferred_element_type=jnp.float32)
    pc = pc + to16(bp).astype(jnp.float32).reshape(1, -1, 1, 1)
    n, _, ho, wo = pc.shape
    pc = pc.reshape(n, OUTPUT_CAPS, OUTPUT_DIM, ho, wo)
    pc = pc.transpose(0, 1, 3, 4, 2).reshape(n, -1, OUTPUT_DIM)
    caps = _squash(pc)
    v, _c = digitcaps_routing(caps, wd, b_route, ROUTING_ITERS)
    probs = jnp.sqrt(jnp.sum(jnp.square(v), axis=2))
    return v, probs, caps


if __name__ == "__main__":
    key = jax.random.PRNGKey(0)
    kx, k1w, k1b, kpw, kpb, kdw = jax.random.split(key, 6)

    # PyTorch Conv2d default uniform init bounds.
    bound1 = 1.0 / math.sqrt(1 * KERNEL_SIZE * KERNEL_SIZE)
    w1 = jax.random.uniform(k1w, (CONV1_CHANNELS, 1, KERNEL_SIZE, KERNEL_SIZE),
                            jnp.float32, -bound1, bound1)
    b1 = jax.random.uniform(k1b, (CONV1_CHANNELS,), jnp.float32, -bound1, bound1)

    boundp = 1.0 / math.sqrt(CONV1_CHANNELS * PC_KERNEL * PC_KERNEL)
    wp = jax.random.uniform(kpw, (C_OUT, CONV1_CHANNELS, PC_KERNEL, PC_KERNEL),
                            jnp.float32, -boundp, boundp)
    bp = jax.random.uniform(kpb, (C_OUT,), jnp.float32, -boundp, boundp)

    # MNIST-shaped input, as LocalFedCapsNet implies: (N, 1, 28, 28).
    x = jax.random.normal(kx, (2, 1, 28, 28), jnp.float32)

    h1 = 28 - KERNEL_SIZE + 1                        # 26
    hp = (h1 - PC_KERNEL) // PC_STRIDE + 1           # 12
    num_caps = OUTPUT_CAPS * hp * hp                 # module's num_primaryCaps
    stdv = 1.0 / math.sqrt(num_caps)                 # CapsLayer.reset_parameters
    wd = jax.random.uniform(kdw, (num_caps, OUTPUT_DIM, N_CLASSES * DIGIT_DIM),
                            jnp.float32, -stdv, stdv)
    b_route = jnp.zeros((num_caps, N_CLASSES), jnp.float32)

    params = (w1, b1, wp, bp, wd, b_route)

    v, probs, caps = jax.block_until_ready(local_fedcaps_forward(x, params))
    v_r, probs_r, caps_r = jax.block_until_ready(reference_forward(x, params))

    assert v.shape == (2, N_CLASSES, DIGIT_DIM), v.shape
    assert probs.shape == (2, N_CLASSES), probs.shape
    assert caps.shape == caps_r.shape == (2, num_caps, OUTPUT_DIM), caps.shape
    # Tolerances cover the EUP approx-reciprocal in the fused squash; the bf16
    # MXU-operand error cancels because both paths use identical bf16 operands.
    for got, ref in ((caps, caps_r), (v, v_r), (probs, probs_r)):
        assert jnp.allclose(got, ref, rtol=1e-2, atol=1e-3), \
            float(jnp.max(jnp.abs(got - ref)))
    print("KERNEL_OK")
</pallas_src>

<mosaic_0001>
module attributes {stable_mosaic.version = 11 : i64} {
  func.func @_conv_relu_kernel(%arg0: i32, %arg1: memref<4x16xbf16, #tpu.memory_space<vmem>>, %arg2: memref<16x768xbf16, #tpu.memory_space<vmem>>, %arg3: memref<4x768xf32, #tpu.memory_space<vmem>>) attributes {dimension_semantics = [#tpu.dimension_semantics<parallel>], iteration_bounds = array<i64: 2>, scalar_prefetch = 0 : i64, scratch_operands = 0 : i64, tpu.core_type = #tpu.core_type<tc>, window_params = [{pipeline_mode = #tpu.pipeline_mode<synchronous>, transform_indices = @transform_0, window_bounds = array<i64: 4, 16>}, {transform_indices = @transform_1, window_bounds = array<i64: 16, 768>}, {transform_indices = @transform_2, window_bounds = array<i64: 4, 768>}]} {
    %c0 = arith.constant 0 : index
    %c0_0 = arith.constant 0 : index
    %0 = vector.load %arg1[%c0, %c0_0] : memref<4x16xbf16, #tpu.memory_space<vmem>>, vector<4x16xbf16>
    %c0_1 = arith.constant 0 : index
    %c0_2 = arith.constant 0 : index
    %1 = vector.load %arg2[%c0_1, %c0_2] : memref<16x768xbf16, #tpu.memory_space<vmem>>, vector<16x768xbf16>
    %cst = arith.constant dense<0.000000e+00> : vector<4x768xf32>
    %2 = tpu.matmul %0, %1, %cst {dimension_numbers = #tpu.dot_dimension_numbers<[1], [0], [0], [1], [0, 0, 1, 1], [], []>} : vector<4x16xbf16>, vector<16x768xbf16>, vector<4x768xf32> -> vector<4x768xf32>
    %cst_3 = arith.constant 0.000000e+00 : f32
    %3 = vector.broadcast %cst_3 : f32 to vector<4x768xf32>
    %4 = arith.maximumf %2, %3 : vector<4x768xf32>
    %c0_4 = arith.constant 0 : index
    %c0_5 = arith.constant 0 : index
    %5 = vector.load %arg3[%c0_4, %c0_5] : memref<4x768xf32, #tpu.memory_space<vmem>>, vector<4x768xf32>
    tpu.vector_store %arg3[%c0_4, %c0_5], %4 {strides = array<i32>} : memref<4x768xf32, #tpu.memory_space<vmem>>, vector<4x768xf32>,
    return
  }
  func.func @transform_0(%arg0: i32) -> (i32, i32) {
    %c0_i32 = arith.constant 0 : i32
    %c0_i32_0 = arith.constant 0 : i32
    %c0_i32_1 = arith.constant 0 : i32
    return %c0_i32, %c0_i32_0 : i32, i32
  }
  func.func @transform_1(%arg0: i32) -> (i32, i32) {
    %c0_i32 = arith.constant 0 : i32
    %c0_i32_0 = arith.constant 0 : i32
    return %c0_i32, %arg0 : i32, i32
  }
  func.func @transform_2(%arg0: i32) -> (i32, i32) {
    %c0_i32 = arith.constant 0 : i32
    %c0_i32_0 = arith.constant 0 : i32
    return %c0_i32, %arg0 : i32, i32
  }
}

module attributes {stable_mosaic.version = 11 : i64} {
  func.func @_primary_caps_kernel(%arg0: i32, %arg1: memref<32x40xbf16, #tpu.memory_space<vmem>>, %arg2: memref<40x256xbf16, #tpu.memory_space<vmem>>, %arg3: memref<32x32xf32, #tpu.memory_space<vmem>>, %arg4: memref<32x256xf32, #tpu.memory_space<vmem>>) attributes {dimension_semantics = [#tpu.dimension_semantics<parallel>], iteration_bounds = array<i64: 2>, scalar_prefetch = 0 : i64, scratch_operands = 0 : i64, tpu.core_type = #tpu.core_type<tc>, window_params = [{pipeline_mode = #tpu.pipeline_mode<synchronous>, transform_indices = @transform_0, window_bounds = array<i64: 32, 40>}, {transform_indices = @transform_1, window_bounds = array<i64: 40, 256>}, {pipeline_mode = #tpu.pipeline_mode<synchronous>, transform_indices = @transform_2, window_bounds = array<i64: 32, 32>}, {transform_indices = @transform_3, window_bounds = array<i64: 32, 256>}]} {
    %c0 = arith.constant 0 : index
    %c0_0 = arith.constant 0 : index
    %0 = vector.load %arg1[%c0, %c0_0] : memref<32x40xbf16, #tpu.memory_space<vmem>>, vector<32x40xbf16>
    %c0_1 = arith.constant 0 : index
    %c0_2 = arith.constant 0 : index
    %1 = vector.load %arg2[%c0_1, %c0_2] : memref<40x256xbf16, #tpu.memory_space<vmem>>, vector<40x256xbf16>
    %cst = arith.constant dense<0.000000e+00> : vector<32x256xf32>
    %2 = tpu.matmul %0, %1, %cst {dimension_numbers = #tpu.dot_dimension_numbers<[1], [0], [0], [1], [0, 0, 1, 1], [], []>} : vector<32x40xbf16>, vector<40x256xbf16>, vector<32x256xf32> -> vector<32x256xf32>
    %c0_3 = arith.constant 0 : index
    %c0_4 = arith.constant 0 : index
    %3 = vector.load %arg3[%c0_3, %c0_4] : memref<32x32xf32, #tpu.memory_space<vmem>>, vector<32x32xf32>
    %4 = arith.mulf %2, %2 : vector<32x256xf32>
    %cst_5 = arith.constant dense<0.000000e+00> : vector<32x256xf32>
    %5 = tpu.matmul %3, %4, %cst_5 {dimension_numbers = #tpu.dot_dimension_numbers<[1], [0], [0], [1], [0, 0, 1, 1], [], []>} : vector<32x32xf32>, vector<32x256xf32>, vector<32x256xf32> -> vector<32x256xf32>
    %6 = math.sqrt %5 : vector<32x256xf32>
    %cst_6 = arith.constant 1.000000e+00 : f32
    %7 = vector.broadcast %cst_6 : f32 to vector<32x256xf32>
    %8 = arith.addf %7, %5 : vector<32x256xf32>
    %9 = tpu.reciprocal %8 {approx = true} : vector<32x256xf32> -> vector<32x256xf32>
    %10 = arith.mulf %6, %9 : vector<32x256xf32>
    %11 = arith.mulf %2, %10 : vector<32x256xf32>
    %c0_7 = arith.constant 0 : index
    %c0_8 = arith.constant 0 : index
    %12 = vector.load %arg4[%c0_7, %c0_8] : memref<32x256xf32, #tpu.memory_space<vmem>>, vector<32x256xf32>
    tpu.vector_store %arg4[%c0_7, %c0_8], %11 {strides = array<i32>} : memref<32x256xf32, #tpu.memory_space<vmem>>, vector<32x256xf32>,
    return
  }
  func.func @transform_0(%arg0: i32) -> (i32, i32) {
    %c0_i32 = arith.constant 0 : i32
    %c0_i32_0 = arith.constant 0 : i32
    %c0_i32_1 = arith.constant 0 : i32
    return %c0_i32, %c0_i32_0 : i32, i32
  }
  func.func @transform_1(%arg0: i32) -> (i32, i32) {
    %c0_i32 = arith.constant 0 : i32
    %c0_i32_0 = arith.constant 0 : i32
    return %c0_i32, %arg0 : i32, i32
  }
  func.func @transform_2(%arg0: i32) -> (i32, i32) {
    %c0_i32 = arith.constant 0 : i32
    %c0_i32_0 = arith.constant 0 : i32
    %c0_i32_1 = arith.constant 0 : i32
    return %c0_i32, %c0_i32_0 : i32, i32
  }
  func.func @transform_3(%arg0: i32) -> (i32, i32) {
    %c0_i32 = arith.constant 0 : i32
    %c0_i32_0 = arith.constant 0 : i32
    return %c0_i32, %arg0 : i32, i32
  }
}

</mosaic_0001>

<llo_original>
// kernel: local_fedcaps_forward.2
$region0: #{local_fedcaps_forward.2}
  #allocation0 [shape = 'u32[]', space=smem, size = 0x4, offset = 0x4, fixed_abs, tag = 'smem constant byte address 0x4 - core index']
  #allocation1 [shape = 'u32[144,128]{1,0:T(1,128)}', space=vmem, size = 0x12000, scoped, tag = 'internal scratch']
  %s0 = inlined_call_operand.vmem [shape: bf16[4,16], index: 0, kind: input, shape index: {}]
  %s1 = inlined_call_operand.vmem [shape: bf16[16,1536], index: 1, kind: input, shape index: {}]
  %s2 = inlined_call_operand.vmem [shape: f32[4,1536], index: 2, kind: output, shape index: {}]
  %s3 = sld [smem:[#allocation0]]
  $region64: #{local_fedcaps_forward.2} parent=0
    _
  %s5 = ssub.s32 1, %s3
  %s6 = scalar_select 0, %s5, %s3
  $region1: #{local_fedcaps_forward.2} parent=0
    #allocation2 [shape = 'u8[49152]{0}', space=vmem, size = 0xc000, scoped, tag = 'input window, operand 1']
    loop: start=0, step=1, limit=4
    $region2: #{local_fedcaps_forward.2} parent=1 // loop_pre_header
      _
    $region3: #{local_fedcaps_forward.2} parent=1 // loop_header
      %s8 = sphi 0, %s12
      %p9 = scmp.ge.s32.totalorder %s8, 4
      %s16 = sphi 0, %s16
      %s18 = sphi 0, %s16
      %s19 = sphi 0, %s18
      %s33 = sphi 0, %s19
      %s39 = sphi 0, %s41
      %s42 = sphi 0, %s39
      %s43 = sphi 0, %s42
      %s59 = sphi 0, %s43
      %s65 = sphi 0, %s67
      %s68 = sphi 0, %s65
      %s69 = sphi 0, %s68
      %s85 = sphi 0, %s69
    $region4: #{local_fedcaps_forward.2} parent=1 // loop_header_branch
      %11 = sbr.rel (%p9) target = $region8
    $region5: #{local_fedcaps_forward.2} parent=1 // loop_body
      %s13 = ssub.s32 %s8, 1
      %s14 = ssub.s32 %s8, 2
      %s15 = sadd.s32 %s8, 1
      %s17 = sadd.s32 %s16, 1
      %p20 = scmp.eq.s32.totalorder %s8, 1
      %p21 = scmp.ne.s32.totalorder %s16, %s18
      %p22 = scmp.eq.s32.totalorder %s8, 0
      %p23 = por %p21, %p22
      %p24 = scmp.ne.s32.totalorder %s16, %s18
      %p25 = scmp.eq.s32.totalorder %s13, 1
      %p26 = por %p24, %p25
      %p27 = scmp.ne.s32.totalorder %s18, %s19
      %p28 = scmp.eq.s32.totalorder %s13, 0
      %p29 = por %p27, %p28
      %p30 = scmp.ne.s32.totalorder %s18, %s19
      %p31 = scmp.eq.s32.totalorder %s14, 1
      %p32 = por %p30, %p31
      %p34 = scmp.ne.s32.totalorder %s19, %s33
      %p35 = scmp.eq.s32.totalorder %s14, 0
      %p36 = por %p34, %p35
      %s37 = ssub.s32 %s8, %s15
      %p38 = scmp.eq.s32.totalorder %s37, 0
      %s40 = sadd.s32 %s39, 1
      %s41 = scalar_select %p38, %s39, %s40
      %p44 = pneg %p38
      %p45 = scmp.eq.s32.totalorder %s8, 1
      %p46 = por %p44, %p45
      %p47 = scmp.ne.s32.totalorder %s39, %s42
      %p48 = scmp.eq.s32.totalorder %s8, 0
      %p49 = por %p47, %p48
      %p50 = scmp.ne.s32.totalorder %s39, %s42
      %p51 = scmp.eq.s32.totalorder %s13, 1
      %p52 = por %p50, %p51
      %p53 = scmp.ne.s32.totalorder %s42, %s43
      %p54 = scmp.eq.s32.totalorder %s13, 0
      %p55 = por %p53, %p54
      %p56 = scmp.ne.s32.totalorder %s42, %s43
      %p57 = scmp.eq.s32.totalorder %s14, 1
      %p58 = por %p56, %p57
      %p60 = scmp.ne.s32.totalorder %s43, %s59
      %p61 = scmp.eq.s32.totalorder %s14, 0
      %p62 = por %p60, %p61
      %s63 = ssub.s32 %s8, %s15
      %p64 = scmp.eq.s32.totalorder %s63, 0
      %s66 = sadd.s32 %s65, 1
      %s67 = scalar_select %p64, %s65, %s66
      %p70 = pneg %p64
      %p71 = scmp.eq.s32.totalorder %s8, 1
      %p72 = por %p70, %p71
      %p73 = scmp.ne.s32.totalorder %s65, %s68
      %p74 = scmp.eq.s32.totalorder %s8, 0
      %p75 = por %p73, %p74
      %p76 = scmp.ne.s32.totalorder %s65, %s68
      %p77 = scmp.eq.s32.totalorder %s13, 1
      %p78 = por %p76, %p77
      %p79 = scmp.ne.s32.totalorder %s68, %s69
      %p80 = scmp.eq.s32.totalorder %s13, 0
      %p81 = por %p79, %p80
      %p82 = scmp.ne.s32.totalorder %s68, %s69
      %p83 = scmp.eq.s32.totalorder %s14, 1
      %p84 = por %p82, %p83
      %p86 = scmp.ne.s32.totalorder %s69, %s85
      %p87 = scmp.eq.s32.totalorder %s14, 0
      %p88 = por %p86, %p87
      %p89 = scmp.le.s32.totalorder 1, %s8
      %p90 = scmp.lt.s32.totalorder %s8, 3
      %p91 = pnand %p89, %p90
      %p92 = pneg %p91
      // Predicated region
      $region9: #{local_fedcaps_forward.2} parent=5 // pred_check
        _
      $region10: #{local_fedcaps_forward.2} parent=5 // pred_check_branch
        %94 = sbr.rel (%p91) target = $region12
      $region11: #{local_fedcaps_forward.2} parent=5 // pred_region
        %s95 = ssub.s32 %s8, 1
        // Predicated region
        $region13: #{local_fedcaps_forward.2} parent=11 // pred_check
          %p96 = pneg %p29
        $region14: #{local_fedcaps_forward.2} parent=11 // pred_check_branch
          %98 = sbr.rel (%p96) target = $region16
        $region15: #{local_fedcaps_forward.2} parent=11 // pred_region
          _
        $region16: #{local_fedcaps_forward.2} parent=11 // pred_fallthru
          _
      $region12: #{local_fedcaps_forward.2} parent=5 // pred_fallthru
        _
      %p99 = scmp.lt.s32.totalorder %s8, 2
      // Predicated region
      $region17: #{local_fedcaps_forward.2} parent=5 // pred_check
        %p100 = pneg %p99
      $region18: #{local_fedcaps_forward.2} parent=5 // pred_check_branch
        %102 = sbr.rel (%p100) target = $region20
      $region19: #{local_fedcaps_forward.2} parent=5 // pred_region
        // Predicated region
        $region21: #{local_fedcaps_forward.2} parent=19 // pred_check
          %p103 = pneg %p49
        $region22: #{local_fedcaps_forward.2} parent=19 // pred_check_branch
          %105 = sbr.rel (%p103) target = $region24
        $region23: #{local_fedcaps_forward.2} parent=19 // pred_region
          %s106 = sand.u32 %s39, 1
          %s107 = sand.u32 %s39, 1
          %s108 = smul.addr %s107, 48
          %s109 = scalar_lea.vmem [#allocation2], %s108
          %s110 = smul.u32 6, %s8
          %s111 = smul.addr %s110, 4
          %s112 = scalar_lea.vmem %s1, %s111
          // Predicated region
          $region25: #{local_fedcaps_forward.2} parent=23 // pred_check
            _
          $region26: #{local_fedcaps_forward.2} parent=23 // pred_check_branch
            %114 = sbr.rel (0) target = $region28
          $region27: #{local_fedcaps_forward.2} parent=23 // pred_region
            // Predicated region
            $region29: #{local_fedcaps_forward.2} parent=27 // pred_check
              _
            $region30: #{local_fedcaps_forward.2} parent=27 // pred_check_branch
              %116 = sbr.rel (0) target = $region32
            $region31: #{local_fedcaps_forward.2} parent=27 // pred_region
              loop: start=0, step=1, limit=1
              $region33: #{local_fedcaps_forward.2} parent=31 // loop_pre_header
                _
              $region34: #{local_fedcaps_forward.2} parent=31 // loop_header
                %s118 = sphi 0, %s122
                %p119 = scmp.ge.s32.totalorder %s118, 1
                %s123 = sphi %s112, %s112
                %s124 = sphi %s109, %s109
              $region35: #{local_fedcaps_forward.2} parent=31 // loop_header_branch
                %121 = sbr.rel (%p119) target = $region39
              $region36: #{local_fedcaps_forward.2} parent=31 // loop_body
                %v125 = vld [vmem:[%s123] sm:$0xff]
                %126 = vst [vmem:[%s124] sm:$0xff] %v125
                %v127 = vld [vmem:[%s123 + $0x8] sm:$0xff]
                %128 = vst [vmem:[%s124 + $0x8] sm:$0xff] %v127
                %v129 = vld [vmem:[%s123 + $0x10] sm:$0xff]
                %130 = vst [vmem:[%s124 + $0x10] sm:$0xff] %v129
                %v131 = vld [vmem:[%s123 + $0x30] sm:$0xff]
                %132 = vst [vmem:[%s124 + $0x18] sm:$0xff] %v131
                %v133 = vld [vmem:[%s123 + $0x38] sm:$0xff]
                %134 = vst [vmem:[%s124 + $0x20] sm:$0xff] %v133
                %v135 = vld [vmem:[%s123 + $0x40] sm:$0xff]
                %136 = vst [vmem:[%s124 + $0x28] sm:$0xff] %v135
              $region37: #{local_fedcaps_forward.2} parent=31 // loop_footer
                %s122 = sadd.s32 1, %s118
              $region38: #{local_fedcaps_forward.2} parent=31 // loop_footer_branch
                %117 = sbr.rel target = $region34
              $region39: #{local_fedcaps_forward.2} parent=31 // loop_exit
                _
            $region32: #{local_fedcaps_forward.2} parent=27 // pred_fallthru
              _
            // Predicated region
            $region40: #{local_fedcaps_forward.2} parent=27 // pred_check
              _
            $region41: #{local_fedcaps_forward.2} parent=27 // pred_check_branch
              %138 = sbr.rel target = $region43
            $region42: #{local_fedcaps_forward.2} parent=27 // pred_region
              _
            $region43: #{local_fedcaps_forward.2} parent=27 // pred_fallthru
              _
          $region28: #{local_fedcaps_forward.2} parent=23 // pred_fallthru
            _
          %139 = vnop
        $region24: #{local_fedcaps_forward.2} parent=19 // pred_fallthru
          _
      $region20: #{local_fedcaps_forward.2} parent=5 // pred_fallthru
        _
      %p140 = scmp.le.s32.totalorder 1, %s8
      %p141 = scmp.lt.s32.totalorder %s8, 3
      %p142 = pnand %p140, %p141
      %p143 = pneg %p142
      // Predicated region
      $region44: #{local_fedcaps_forward.2} parent=5 // pred_check
        _
      $region45: #{local_fedcaps_forward.2} parent=5 // pred_check_branch
        %145 = sbr.rel (%p142) target = $region47
      $region46: #{local_fedcaps_forward.2} parent=5 // pred_region
        %s146 = ssub.s32 %s8, 1
        %s147 = sand.u32 %s42, 1
        %s148 = sand.u32 %s42, 1
        %s149 = smul.addr %s148, 48
        %s150 = scalar_lea.vmem [#allocation2], %s149
        // Predicated region
        $region48: #{local_fedcaps_forward.2} parent=46 // pred_check
          %p151 = pneg %p55
        $region49: #{local_fedcaps_forward.2} parent=46 // pred_check_branch
          %153 = sbr.rel (%p151) target = $region51
        $region50: #{local_fedcaps_forward.2} parent=46 // pred_region
          _
        $region51: #{local_fedcaps_forward.2} parent=46 // pred_fallthru
          _
        %p154 = pneg %p29
        %p155 = pneg %p26
        %s156 = sand.u32 %s42, 1
        %s157 = sand.u32 %s42, 1
        %s158 = smul.addr %s157, 48
        %s159 = scalar_lea.vmem [#allocation2], %s158
        %p160 = pneg %p55
        %p161 = pneg %p52
        %p162 = pneg %p81
        %p163 = pneg %p78
        %s164 = smul.u32 6, %s13
        %p165 = scmp.lt.s32.totalorder %s164, 11
        %s166 = scalar_select %p165, %s164, 11
        %s167 = smul.addr %s166, 4
        %s168 = scalar_lea.vmem %s2, %s167
        %s169 = smul.u32 6, %s13
        %s170 = smul.u32 6, %s13
        %p171 = scmp.lt.s32.totalorder %s170, 11
        %s172 = scalar_select %p171, %s170, 11
        %s173 = smul.addr %s172, 4
        %s174 = scalar_lea.vmem %s2, %s173
        %s175 = smul.u32 6, %s13
        %v177 = vld [vmem:[%s0] sm:$0x3]
        %v178 = vld [vmem:[%s150] sm:$0xff]
        %v179 = vld [vmem:[%s150 + $0x8] sm:$0xff]
        %v180 = vld [vmem:[%s150 + $0x10] sm:$0xff]
        %v181 = vld [vmem:[%s150 + $0x18] sm:$0xff]
        %v182 = vld [vmem:[%s150 + $0x20] sm:$0xff]
        %v183 = vld [vmem:[%s150 + $0x28] sm:$0xff]
        %v190 = vunpack.c.l.b16 %v178
        %v191 = vunpack.c.h.b16 %v178
        %v192 = vunpack.c.l.b16 %v179
        %v193 = vunpack.c.h.b16 %v179
        %v194 = vunpack.c.l.b16 %v180
        %v195 = vunpack.c.h.b16 %v180
        %v196 = vunpack.c.l.b16 %v181
        %v197 = vunpack.c.h.b16 %v181
        %v198 = vunpack.c.l.b16 %v182
        %v199 = vunpack.c.h.b16 %v182
        %v200 = vunpack.c.l.b16 %v183
        %v201 = vunpack.c.h.b16 %v183
        %v202 = vpack.c.b16 %v196, %v190
        %v203 = vpack.c.b16 %v197, %v191
        %v204 = vpack.c.b16 %v198, %v192
        %v205 = vpack.c.b16 %v199, %v193
        %v206 = vpack.c.b16 %v200, %v194
        %v207 = vpack.c.b16 %v201, %v195
        %vm214 = vcmask 130048
        %v216 = vsel %vm214, %v177, 0
        %218 = vmatprep.subr.bf16.mxu0 %v203
        %219 = vmatpush1.bf16.msra.mxu0 %v202
        %220 = vmatprep.subr.bf16.mxu0 0
        %221 = vmatpush1.bf16.msra.mxu0 0
        %222 = vmatprep.subr.bf16.mxu0 0
        %223 = vmatpush1.bf16.msra.mxu0 0
        %224 = vmatprep.subr.bf16.mxu0 0
        %225 = vmatpush1.bf16.msra.mxu0 0
        %226 = vmatprep.subr.bf16.mxu0 0
        %227 = vmatpush1.bf16.msra.mxu0 0
        %228 = vmatprep.subr.bf16.mxu0 0
        %229 = vmatpush1.bf16.msra.mxu0 0
        %230 = vmatprep.subr.bf16.mxu0 0
        %231 = vmatpush1.bf16.msra.mxu0 0
        %232 = vmatprep.subr.bf16.mxu0 0
        %233 = vmatpush1.bf16.msra.mxu0 0
        %234 = vmatprep.subr.bf16.mxu0 0
        %235 = vmatpush1.bf16.msra.mxu0 0
        %236 = vmatprep.subr.bf16.mxu0 0
        %237 = vmatpush1.bf16.msra.mxu0 0
        %238 = vmatprep.subr.bf16.mxu0 0
        %239 = vmatpush1.bf16.msra.mxu0 0
        %240 = vmatprep.subr.bf16.mxu0 0
        %241 = vmatpush1.bf16.msra.mxu0 0
        %242 = vmatprep.subr.bf16.mxu0 0
        %243 = vmatpush1.bf16.msra.mxu0 0
        %244 = vmatprep.subr.bf16.mxu0 0
        %245 = vmatpush1.bf16.msra.mxu0 0
        %246 = vmatprep.subr.bf16.mxu0 0
        %247 = vmatpush1.bf16.msra.mxu0 0
        %248 = vmatprep.subr.bf16.mxu0 0
        %249 = vmatpush1.bf16.msra.mxu0 0
        %250 = vmatprep.mubr.bf16.mxu0 0
        %251 = vmatmul.mubr.bf16.gmra.mrb[0].mxu0 %v216
        %v252 = vpop.f32.mrb[0].mxu0
        %v253 = vadd.f32 0.0, %v252
        %v254 = vpop.f32.mrb[0].mxu0
        %v255 = vadd.f32 0.0, %v254
        %v256 = vpop.f32.mrb[0].mxu0
        %v257 = vpop.f32.mrb[0].mxu0
        %258 = vdwg.mxu0
        %259 = vmatprep.subr.bf16.mxu0 %v205
        %260 = vmatpush1.bf16.msra.mxu0 %v204
        %261 = vmatprep.subr.bf16.mxu0 0
        %262 = vmatpush1.bf16.msra.mxu0 0
        %263 = vmatprep.subr.bf16.mxu0 0
        %264 = vmatpush1.bf16.msra.mxu0 0
        %265 = vmatprep.subr.bf16.mxu0 0
        %266 = vmatpush1.bf16.msra.mxu0 0
        %267 = vmatprep.subr.bf16.mxu0 0
        %268 = vmatpush1.bf16.msra.mxu0 0
        %269 = vmatprep.subr.bf16.mxu0 0
        %270 = vmatpush1.bf16.msra.mxu0 0
        %271 = vmatprep.subr.bf16.mxu0 0
        %272 = vmatpush1.bf16.msra.mxu0 0
        %273 = vmatprep.subr.bf16.mxu0 0
        %274 = vmatpush1.bf16.msra.mxu0 0
        %275 = vmatprep.subr.bf16.mxu0 0
        %276 = vmatpush1.bf16.msra.mxu0 0
        %277 = vmatprep.subr.bf16.mxu0 0
        %278 = vmatpush1.bf16.msra.mxu0 0
        %279 = vmatprep.subr.bf16.mxu0 0
        %280 = vmatpush1.bf16.msra.mxu0 0
        %281 = vmatprep.subr.bf16.mxu0 0
        %282 = vmatpush1.bf16.msra.mxu0 0
        %283 = vmatprep.subr.bf16.mxu0 0
        %284 = vmatpush1.bf16.msra.mxu0 0
        %285 = vmatprep.subr.bf16.mxu0 0
        %286 = vmatpush1.bf16.msra.mxu0 0
        %287 = vmatprep.subr.bf16.mxu0 0
        %288 = vmatpush1.bf16.msra.mxu0 0
        %289 = vmatprep.subr.bf16.mxu0 0
        %290 = vmatpush1.bf16.msra.mxu0 0
        %291 = vmatprep.mubr.bf16.mxu0 0
        %292 = vmatmul.mubr.bf16.gmra.mrb[0].mxu0 %v216
        %v293 = vpop.f32.mrb[0].mxu0
        %v294 = vadd.f32 0.0, %v293
        %v295 = vpop.f32.mrb[0].mxu0
        %v296 = vadd.f32 0.0, %v295
        %v297 = vpop.f32.mrb[0].mxu0
        %v298 = vpop.f32.mrb[0].mxu0
        %299 = vdwg.mxu0
        %300 = vmatprep.subr.bf16.mxu0 %v207
        %301 = vmatpush1.bf16.msra.mxu0 %v206
        %302 = vmatprep.subr.bf16.mxu0 0
        %303 = vmatpush1.bf16.msra.mxu0 0
        %304 = vmatprep.subr.bf16.mxu0 0
        %305 = vmatpush1.bf16.msra.mxu0 0
        %306 = vmatprep.subr.bf16.mxu0 0
        %307 = vmatpush1.bf16.msra.mxu0 0
        %308 = vmatprep.subr.bf16.mxu0 0
        %309 = vmatpush1.bf16.msra.mxu0 0
        %310 = vmatprep.subr.bf16.mxu0 0
        %311 = vmatpush1.bf16.msra.mxu0 0
        %312 = vmatprep.subr.bf16.mxu0 0
        %313 = vmatpush1.bf16.msra.mxu0 0
        %314 = vmatprep.subr.bf16.mxu0 0
        %315 = vmatpush1.bf16.msra.mxu0 0
        %316 = vmatprep.subr.bf16.mxu0 0
        %317 = vmatpush1.bf16.msra.mxu0 0
        %318 = vmatprep.subr.bf16.mxu0 0
        %319 = vmatpush1.bf16.msra.mxu0 0
        %320 = vmatprep.subr.bf16.mxu0 0
        %321 = vmatpush1.bf16.msra.mxu0 0
        %322 = vmatprep.subr.bf16.mxu0 0
        %323 = vmatpush1.bf16.msra.mxu0 0
        %324 = vmatprep.subr.bf16.mxu0 0
        %325 = vmatpush1.bf16.msra.mxu0 0
        %326 = vmatprep.subr.bf16.mxu0 0
        %327 = vmatpush1.bf16.msra.mxu0 0
        %328 = vmatprep.subr.bf16.mxu0 0
        %329 = vmatpush1.bf16.msra.mxu0 0
        %330 = vmatprep.subr.bf16.mxu0 0
        %331 = vmatpush1.bf16.msra.mxu0 0
        %332 = vmatprep.mubr.bf16.mxu0 0
        %333 = vmatmul.mubr.bf16.gmra.mrb[0].mxu0 %v216
        %v334 = vpop.f32.mrb[0].mxu0
        %v335 = vadd.f32 0.0, %v334
        %v336 = vpop.f32.mrb[0].mxu0
        %v337 = vadd.f32 0.0, %v336
        %v338 = vpop.f32.mrb[0].mxu0
        %v339 = vpop.f32.mrb[0].mxu0
        %340 = vdwg.mxu0
        %v341 = vmax.f32 %v253, 0.0
        %v342 = vmax.f32 %v255, 0.0
        %v343 = vmax.f32 %v294, 0.0
        %v344 = vmax.f32 %v296, 0.0
        %v345 = vmax.f32 %v335, 0.0
        %v346 = vmax.f32 %v337, 0.0
        %v353 = vcombine.low %v341, %v342
        %v354 = vcombine.low %v343, %v344
        %v355 = vcombine.low %v345, %v346
        %359 = vst [vmem:[%s174] sm:$0xff] %v353
        %360 = vst [vmem:[%s174 + $0x8] sm:$0xff] %v354
        %361 = vst [vmem:[%s174 + $0x10] sm:$0xff] %v355
        %s362 = smul.u32 6, %s13
        %p363 = scmp.lt.s32.totalorder %s362, 11
        %s364 = scalar_select %p363, %s362, 11
        %s365 = smul.addr %s364, 4
        %s366 = scalar_lea.vmem %s2, %s365
        // Predicated region
        $region52: #{local_fedcaps_forward.2} parent=46 // pred_check
          %p367 = pneg %p78
        $region53: #{local_fedcaps_forward.2} parent=46 // pred_check_branch
          %369 = sbr.rel (%p367) target = $region55
        $region54: #{local_fedcaps_forward.2} parent=46 // pred_region
          %s370 = smul.u32 6, %s13
        $region55: #{local_fedcaps_forward.2} parent=46 // pred_fallthru
          _
      $region47: #{local_fedcaps_forward.2} parent=5 // pred_fallthru
        _
      %p371 = scmp.le.s32.totalorder 2, %s8
      // Predicated region
      $region56: #{local_fedcaps_forward.2} parent=5 // pred_check
        %p372 = pneg %p371
      $region57: #{local_fedcaps_forward.2} parent=5 // pred_check_branch
        %374 = sbr.rel (%p372) target = $region59
      $region58: #{local_fedcaps_forward.2} parent=5 // pred_region
        %s375 = ssub.s32 %s8, 2
        // Predicated region
        $region60: #{local_fedcaps_forward.2} parent=58 // pred_check
          %p376 = pneg %p84
        $region61: #{local_fedcaps_forward.2} parent=58 // pred_check_branch
          %378 = sbr.rel (%p376) target = $region63
        $region62: #{local_fedcaps_forward.2} parent=58 // pred_region
          %s379 = smul.u32 6, %s14
          %p380 = scmp.lt.s32.totalorder %s379, 11
          %s381 = scalar_select %p380, %s379, 11
          %s382 = smul.addr %s381, 4
          %s383 = scalar_lea.vmem %s2, %s382
        $region63: #{local_fedcaps_forward.2} parent=58 // pred_fallthru
          _
      $region59: #{local_fedcaps_forward.2} parent=5 // pred_fallthru
        _
    $region6: #{local_fedcaps_forward.2} parent=1 // loop_footer
      %s12 = sadd.s32 1, %s8
    $region7: #{local_fedcaps_forward.2} parent=1 // loop_footer_branch
      %7 = sbr.rel target = $region3
    $region8: #{local_fedcaps_forward.2} parent=1 // loop_exit
      _

// kernel: local_fedcaps_forward.3
$region0: #{local_fedcaps_forward.3}
  #allocation0 [shape = 'u32[]', space=smem, size = 0x4, offset = 0x4, fixed_abs, tag = 'smem constant byte address 0x4 - core index']
  #allocation1 [shape = 'u32[144,128]{1,0:T(1,128)}', space=vmem, size = 0x12000, scoped, tag = 'internal scratch']
  %s0 = inlined_call_operand.vmem [shape: bf16[32,40], index: 0, kind: input, shape index: {}]
  %s1 = inlined_call_operand.vmem [shape: bf16[40,512], index: 1, kind: input, shape index: {}]
  %s2 = inlined_call_operand.vmem [shape: f32[32,32], index: 2, kind: input, shape index: {}]
  %s3 = inlined_call_operand.vmem [shape: f32[32,512], index: 3, kind: output, shape index: {}]
  %s4 = sld [smem:[#allocation0]]
  $region102: #{local_fedcaps_forward.3} parent=0
    _
  %s6 = ssub.s32 1, %s4
  %s7 = scalar_select 0, %s6, %s4
  $region1: #{local_fedcaps_forward.3} parent=0
    #allocation2 [shape = 'u8[40960]{0}', space=vmem, size = 0xa000, scoped, tag = 'input window, operand 1']
    #allocation3 [shape = 'u8[65536]{0}', space=vmem, size = 0x10000, scoped, tag = 'output window, operand 0']
    loop: start=0, step=1, limit=4
    $region2: #{local_fedcaps_forward.3} parent=1 // loop_pre_header
      _
    $region3: #{local_fedcaps_forward.3} parent=1 // loop_header
      %s9 = sphi 0, %s13
      %p10 = scmp.ge.s32.totalorder %s9, 4
      %s17 = sphi 0, %s17
      %s19 = sphi 0, %s17
      %s20 = sphi 0, %s19
      %s34 = sphi 0, %s20
      %s40 = sphi 0, %s42
      %s43 = sphi 0, %s40
      %s44 = sphi 0, %s43
      %s60 = sphi 0, %s44
      %s64 = sphi 0, %s64
      %s66 = sphi 0, %s64
      %s67 = sphi 0, %s66
      %s81 = sphi 0, %s67
      %s87 = sphi 0, %s89
      %s90 = sphi 0, %s87
      %s91 = sphi 0, %s90
      %s107 = sphi 0, %s91
    $region4: #{local_fedcaps_forward.3} parent=1 // loop_header_branch
      %12 = sbr.rel (%p10) target = $region8
    $region5: #{local_fedcaps_forward.3} parent=1 // loop_body
      %s14 = ssub.s32 %s9, 1
      %s15 = ssub.s32 %s9, 2
      %s16 = sadd.s32 %s9, 1
      %s18 = sadd.s32 %s17, 1
      %p21 = scmp.eq.s32.totalorder %s9, 1
      %p22 = scmp.ne.s32.totalorder %s17, %s19
      %p23 = scmp.eq.s32.totalorder %s9, 0
      %p24 = por %p22, %p23
      %p25 = scmp.ne.s32.totalorder %s17, %s19
      %p26 = scmp.eq.s32.totalorder %s14, 1
      %p27 = por %p25, %p26
      %p28 = scmp.ne.s32.totalorder %s19, %s20
      %p29 = scmp.eq.s32.totalorder %s14, 0
      %p30 = por %p28, %p29
      %p31 = scmp.ne.s32.totalorder %s19, %s20
      %p32 = scmp.eq.s32.totalorder %s15, 1
      %p33 = por %p31, %p32
      %p35 = scmp.ne.s32.totalorder %s20, %s34
      %p36 = scmp.eq.s32.totalorder %s15, 0
      %p37 = por %p35, %p36
      %s38 = ssub.s32 %s9, %s16
      %p39 = scmp.eq.s32.totalorder %s38, 0
      %s41 = sadd.s32 %s40, 1
      %s42 = scalar_select %p39, %s40, %s41
      %p45 = pneg %p39
      %p46 = scmp.eq.s32.totalorder %s9, 1
      %p47 = por %p45, %p46
      %p48 = scmp.ne.s32.totalorder %s40, %s43
      %p49 = scmp.eq.s32.totalorder %s9, 0
      %p50 = por %p48, %p49
      %p51 = scmp.ne.s32.totalorder %s40, %s43
      %p52 = scmp.eq.s32.totalorder %s14, 1
      %p53 = por %p51, %p52
      %p54 = scmp.ne.s32.totalorder %s43, %s44
      %p55 = scmp.eq.s32.totalorder %s14, 0
      %p56 = por %p54, %p55
      %p57 = scmp.ne.s32.totalorder %s43, %s44
      %p58 = scmp.eq.s32.totalorder %s15, 1
      %p59 = por %p57, %p58
      %p61 = scmp.ne.s32.totalorder %s44, %s60
      %p62 = scmp.eq.s32.totalorder %s15, 0
      %p63 = por %p61, %p62
      %s65 = sadd.s32 %s64, 1
      %p68 = scmp.eq.s32.totalorder %s9, 1
      %p69 = scmp.ne.s32.totalorder %s64, %s66
      %p70 = scmp.eq.s32.totalorder %s9, 0
      %p71 = por %p69, %p70
      %p72 = scmp.ne.s32.totalorder %s64, %s66
      %p73 = scmp.eq.s32.totalorder %s14, 1
      %p74 = por %p72, %p73
      %p75 = scmp.ne.s32.totalorder %s66, %s67
      %p76 = scmp.eq.s32.totalorder %s14, 0
      %p77 = por %p75, %p76
      %p78 = scmp.ne.s32.totalorder %s66, %s67
      %p79 = scmp.eq.s32.totalorder %s15, 1
      %p80 = por %p78, %p79
      %p82 = scmp.ne.s32.totalorder %s67, %s81
      %p83 = scmp.eq.s32.totalorder %s15, 0
      %p84 = por %p82, %p83
      %s85 = ssub.s32 %s9, %s16
      %p86 = scmp.eq.s32.totalorder %s85, 0
      %s88 = sadd.s32 %s87, 1
      %s89 = scalar_select %p86, %s87, %s88
      %p92 = pneg %p86
      %p93 = scmp.eq.s32.totalorder %s9, 1
      %p94 = por %p92, %p93
      %p95 = scmp.ne.s32.totalorder %s87, %s90
      %p96 = scmp.eq.s32.totalorder %s9, 0
      %p97 = por %p95, %p96
      %p98 = scmp.ne.s32.totalorder %s87, %s90
      %p99 = scmp.eq.s32.totalorder %s14, 1
      %p100 = por %p98, %p99
      %p101 = scmp.ne.s32.totalorder %s90, %s91
      %p102 = scmp.eq.s32.totalorder %s14, 0
      %p103 = por %p101, %p102
      %p104 = scmp.ne.s32.totalorder %s90, %s91
      %p105 = scmp.eq.s32.totalorder %s15, 1
      %p106 = por %p104, %p105
      %p108 = scmp.ne.s32.totalorder %s91, %s107
      %p109 = scmp.eq.s32.totalorder %s15, 0
      %p110 = por %p108, %p109
      %p111 = scmp.le.s32.totalorder 1, %s9
      %p112 = scmp.lt.s32.totalorder %s9, 3
      %p113 = pnand %p111, %p112
      %p114 = pneg %p113
      // Predicated region
      $region9: #{local_fedcaps_forward.3} parent=5 // pred_check
        _
      $region10: #{local_fedcaps_forward.3} parent=5 // pred_check_branch
        %116 = sbr.rel (%p113) target = $region12
      $region11: #{local_fedcaps_forward.3} parent=5 // pred_region
        %s117 = ssub.s32 %s9, 1
        // Predicated region
        $region13: #{local_fedcaps_forward.3} parent=11 // pred_check
          %p118 = pneg %p30
        $region14: #{local_fedcaps_forward.3} parent=11 // pred_check_branch
          %120 = sbr.rel (%p118) target = $region16
        $region15: #{local_fedcaps_forward.3} parent=11 // pred_region
          _
        $region16: #{local_fedcaps_forward.3} parent=11 // pred_fallthru
          _
        // Predicated region
        $region17: #{local_fedcaps_forward.3} parent=11 // pred_check
          %p121 = pneg %p77
        $region18: #{local_fedcaps_forward.3} parent=11 // pred_check_branch
          %123 = sbr.rel (%p121) target = $region20
        $region19: #{local_fedcaps_forward.3} parent=11 // pred_region
          _
        $region20: #{local_fedcaps_forward.3} parent=11 // pred_fallthru
          _
      $region12: #{local_fedcaps_forward.3} parent=5 // pred_fallthru
        _
      %p124 = scmp.lt.s32.totalorder %s9, 2
      // Predicated region
      $region21: #{local_fedcaps_forward.3} parent=5 // pred_check
        %p125 = pneg %p124
      $region22: #{local_fedcaps_forward.3} parent=5 // pred_check_branch
        %127 = sbr.rel (%p125) target = $region24
      $region23: #{local_fedcaps_forward.3} parent=5 // pred_region
        // Predicated region
        $region25: #{local_fedcaps_forward.3} parent=23 // pred_check
          %p128 = pneg %p50
        $region26: #{local_fedcaps_forward.3} parent=23 // pred_check_branch
          %130 = sbr.rel (%p128) target = $region28
        $region27: #{local_fedcaps_forward.3} parent=23 // pred_region
          %s131 = sand.u32 %s40, 1
          %s132 = sand.u32 %s40, 1
          %s133 = smul.addr %s132, 40
          %s134 = scalar_lea.vmem [#allocation2], %s133
          %s135 = smul.u32 2, %s9
          %s136 = smul.addr %s135, 4
          %s137 = scalar_lea.vmem %s1, %s136
          // Predicated region
          $region29: #{local_fedcaps_forward.3} parent=27 // pred_check
            _
          $region30: #{local_fedcaps_forward.3} parent=27 // pred_check_branch
            %139 = sbr.rel (0) target = $region32
          $region31: #{local_fedcaps_forward.3} parent=27 // pred_region
            // Predicated region
            $region33: #{local_fedcaps_forward.3} parent=31 // pred_check
              _
            $region34: #{local_fedcaps_forward.3} parent=31 // pred_check_branch
              %141 = sbr.rel (0) target = $region36
            $region35: #{local_fedcaps_forward.3} parent=31 // pred_region
              // Predicated region
              $region48: #{local_fedcaps_forward.3} parent=35 // pred_check
                _
              $region49: #{local_fedcaps_forward.3} parent=35 // pred_check_branch
                %164 = sbr.rel (0) target = $region51
              $region50: #{local_fedcaps_forward.3} parent=35 // pred_region
                loop: start=0, step=1, limit=1
                $region52: #{local_fedcaps_forward.3} parent=50 // loop_pre_header
                  _
                $region53: #{local_fedcaps_forward.3} parent=50 // loop_header
                  %s166 = sphi 0, %s170
                  %p167 = scmp.ge.s32.totalorder %s166, 1
                  %s171 = sphi %s137, %s137
                  %s172 = sphi %s134, %s134
                $region54: #{local_fedcaps_forward.3} parent=50 // loop_header_branch
                  %169 = sbr.rel (%p167) target = $region58
                $region55: #{local_fedcaps_forward.3} parent=50 // loop_body
                  %v173 = vld [vmem:[%s171] sm:$0xff]
                  %174 = vst [vmem:[%s172] sm:$0xff] %v173
                  %v175 = vld [vmem:[%s171 + $0x10] sm:$0xff]
                  %176 = vst [vmem:[%s172 + $0x8] sm:$0xff] %v175
                  %v177 = vld [vmem:[%s171 + $0x20] sm:$0xff]
                  %178 = vst [vmem:[%s172 + $0x10] sm:$0xff] %v177
                  %v179 = vld [vmem:[%s171 + $0x30] sm:$0xff]
                  %180 = vst [vmem:[%s172 + $0x18] sm:$0xff] %v179
                  %v181 = vld [vmem:[%s171 + $0x40] sm:$0xff]
                  %182 = vst [vmem:[%s172 + $0x20] sm:$0xff] %v181
                $region56: #{local_fedcaps_forward.3} parent=50 // loop_footer
                  %s170 = sadd.s32 1, %s166
                $region57: #{local_fedcaps_forward.3} parent=50 // loop_footer_branch
                  %165 = sbr.rel target = $region53
                $region58: #{local_fedcaps_forward.3} parent=50 // loop_exit
                  _
              $region51: #{local_fedcaps_forward.3} parent=35 // pred_fallthru
                _
              // Predicated region
              $region59: #{local_fedcaps_forward.3} parent=35 // pred_check
                _
              $region60: #{local_fedcaps_forward.3} parent=35 // pred_check_branch
                %184 = sbr.rel target = $region62
              $region61: #{local_fedcaps_forward.3} parent=35 // pred_region
                _
              $region62: #{local_fedcaps_forward.3} parent=35 // pred_fallthru
                _
            $region36: #{local_fedcaps_forward.3} parent=31 // pred_fallthru
              _
            // Predicated region
            $region37: #{local_fedcaps_forward.3} parent=31 // pred_check
              _
            $region38: #{local_fedcaps_forward.3} parent=31 // pred_check_branch
              %143 = sbr.rel target = $region40
            $region39: #{local_fedcaps_forward.3} parent=31 // pred_region
              loop: start=0, step=1, limit=1
              $region41: #{local_fedcaps_forward.3} parent=39 // loop_pre_header
                _
              $region42: #{local_fedcaps_forward.3} parent=39 // loop_header
                %s146 = sphi 0, %s150
                %p147 = scmp.ge.s32.totalorder %s146, 1
                %s151 = sphi %s137, %s137
                %s152 = sphi %s134, %s134
              $region43: #{local_fedcaps_forward.3} parent=39 // loop_header_branch
                %149 = sbr.rel (%p147) target = $region47
              $region44: #{local_fedcaps_forward.3} parent=39 // loop_body
                %v153 = vld [vmem:[%s151] sm:$0xff]
                %154 = vst [vmem:[%s152] sm:$0xff] %v153
                %v155 = vld [vmem:[%s151 + $0x10] sm:$0xff]
                %156 = vst [vmem:[%s152 + $0x8] sm:$0xff] %v155
                %v157 = vld [vmem:[%s151 + $0x20] sm:$0xff]
                %158 = vst [vmem:[%s152 + $0x10] sm:$0xff] %v157
                %v159 = vld [vmem:[%s151 + $0x30] sm:$0xff]
                %160 = vst [vmem:[%s152 + $0x18] sm:$0xff] %v159
                %v161 = vld [vmem:[%s151 + $0x40] sm:$0xff]
                %162 = vst [vmem:[%s152 + $0x20] sm:$0xff] %v161
              $region45: #{local_fedcaps_forward.3} parent=39 // loop_footer
                %s150 = sadd.s32 1, %s146
              $region46: #{local_fedcaps_forward.3} parent=39 // loop_footer_branch
                %145 = sbr.rel target = $region42
              $region47: #{local_fedcaps_forward.3} parent=39 // loop_exit
                _
            $region40: #{local_fedcaps_forward.3} parent=31 // pred_fallthru
              _
          $region32: #{local_fedcaps_forward.3} parent=27 // pred_fallthru
            _
          %185 = vnop
        $region28: #{local_fedcaps_forward.3} parent=23 // pred_fallthru
          _
      $region24: #{local_fedcaps_forward.3} parent=5 // pred_fallthru
        _
      %p186 = scmp.le.s32.totalorder 1, %s9
      %p187 = scmp.lt.s32.totalorder %s9, 3
      %p188 = pnand %p186, %p187
      %p189 = pneg %p188
      // Predicated region
      $region63: #{local_fedcaps_forward.3} parent=5 // pred_check
        _
      $region64: #{local_fedcaps_forward.3} parent=5 // pred_check_branch
        %191 = sbr.rel (%p188) target = $region66
      $region65: #{local_fedcaps_forward.3} parent=5 // pred_region
        %s192 = ssub.s32 %s9, 1
        %s193 = sand.u32 %s43, 1
        %s194 = sand.u32 %s43, 1
        %s195 = smul.addr %s194, 40
        %s196 = scalar_lea.vmem [#allocation2], %s195
        // Predicated region
        $region67: #{local_fedcaps_forward.3} parent=65 // pred_check
          %p197 = pneg %p56
        $region68: #{local_fedcaps_forward.3} parent=65 // pred_check_branch
          %199 = sbr.rel (%p197) target = $region70
        $region69: #{local_fedcaps_forward.3} parent=65 // pred_region
          _
        $region70: #{local_fedcaps_forward.3} parent=65 // pred_fallthru
          _
        %p200 = pneg %p30
        %p201 = pneg %p27
        %s202 = sand.u32 %s43, 1
        %s203 = sand.u32 %s43, 1
        %s204 = smul.addr %s203, 40
        %s205 = scalar_lea.vmem [#allocation2], %s204
        %p206 = pneg %p56
        %p207 = pneg %p53
        %p208 = pneg %p77
        %p209 = pneg %p74
        %p210 = pneg %p103
        %p211 = pneg %p100
        %s212 = sand.u32 %s90, 1
        %s213 = sand.u32 %s90, 1
        %s214 = smul.addr %s213, 64
        %s215 = scalar_lea.vmem [#allocation3], %s214
        %s216 = smul.u32 2, %s14
        %s217 = smul.u32 2, %s14
        %v219 = vld [vmem:[%s0] sm:$0xf]
        %v220 = vld [vmem:[%s0 + $0x4] sm:$0xf]
        %v221 = vld [vmem:[%s0 + $0x8] sm:$0xf]
        %v222 = vld [vmem:[%s0 + $0xc] sm:$0xf]
        %v223 = vld [vmem:[%s196] sm:$0xff]
        %v224 = vld [vmem:[%s196 + $0x8] sm:$0xff]
        %v225 = vld [vmem:[%s196 + $0x10] sm:$0xff]
        %v226 = vld [vmem:[%s196 + $0x18] sm:$0xff]
        %v227 = vld [vmem:[%s196 + $0x20] sm:$0xff]
        %v232 = vunpack.c.l.b16 %v219
        %v233 = vunpack.c.l.b16 %v220
        %v234 = vunpack.c.l.b16 %v221
        %v235 = vunpack.c.l.b16 %v222
        %v236 = vpack.c.b16 %v233, %v232
        %v237 = vpack.c.b16 %v235, %v234
        %v243 = vunpack.c.l.b16 %v223
        %v244 = vunpack.c.h.b16 %v223
        %v245 = vunpack.c.l.b16 %v224
        %v246 = vunpack.c.h.b16 %v224
        %v247 = vunpack.c.l.b16 %v225
        %v248 = vunpack.c.h.b16 %v225
        %v249 = vunpack.c.l.b16 %v226
        %v250 = vunpack.c.h.b16 %v226
        %v251 = vunpack.c.l.b16 %v227
        %v252 = vunpack.c.h.b16 %v227
        %v253 = vpack.c.b16 %v245, %v243
        %v254 = vpack.c.b16 %v246, %v244
        %v255 = vpack.c.b16 %v249, %v247
        %v256 = vpack.c.b16 %v250, %v248
        %v257 = vpack.c.b16 %v251, %v251
        %v258 = vpack.c.b16 %v252, %v252
        %vm263 = vcmask 326656
        %v265 = vsel %vm263, %v236, 0
        %v268 = vsel %vm263, %v237, 0
        %vm270 = vcmask 1043456
        %v272 = vsel %vm270, %v257, 0
        %v275 = vsel %vm270, %v258, 0
        %277 = vmatprep.subr.bf16.mxu0 %v254
        %278 = vmatpush1.bf16.msra.mxu0 %v253
        %279 = vmatprep.subr.bf16.mxu0 %v256
        %280 = vmatpush1.bf16.msra.mxu0 %v255
        %281 = vmatprep.subr.bf16.mxu0 %v275
        %282 = vmatpush1.bf16.msra.mxu0 %v272
        %283 = vmatprep.subr.bf16.mxu0 0
        %284 = vmatpush1.bf16.msra.mxu0 0
        %285 = vmatprep.subr.bf16.mxu0 0
        %286 = vmatpush1.bf16.msra.mxu0 0
        %287 = vmatprep.subr.bf16.mxu0 0
        %288 = vmatpush1.bf16.msra.mxu0 0
        %289 = vmatprep.subr.bf16.mxu0 0
        %290 = vmatpush1.bf16.msra.mxu0 0
        %291 = vmatprep.subr.bf16.mxu0 0
        %292 = vmatpush1.bf16.msra.mxu0 0
        %293 = vmatprep.subr.bf16.mxu0 0
        %294 = vmatpush1.bf16.msra.mxu0 0
        %295 = vmatprep.subr.bf16.mxu0 0
        %296 = vmatpush1.bf16.msra.mxu0 0
        %297 = vmatprep.subr.bf16.mxu0 0
        %298 = vmatpush1.bf16.msra.mxu0 0
        %299 = vmatprep.subr.bf16.mxu0 0
        %300 = vmatpush1.bf16.msra.mxu0 0
        %301 = vmatprep.subr.bf16.mxu0 0
        %302 = vmatpush1.bf16.msra.mxu0 0
        %303 = vmatprep.subr.bf16.mxu0 0
        %304 = vmatpush1.bf16.msra.mxu0 0
        %305 = vmatprep.subr.bf16.mxu0 0
        %306 = vmatpush1.bf16.msra.mxu0 0
        %307 = vmatprep.subr.bf16.mxu0 0
        %308 = vmatpush1.bf16.msra.mxu0 0
        %309 = vmatprep.mubr.bf16.mxu0 0
        %310 = vmatmul.mubr.bf16.gmra.mrb[0].mxu0 %v265
        %v311 = vpop.f32.mrb[0].mxu0
        %v312 = vadd.f32 0.0, %v311
        %v313 = vpop.f32.mrb[0].mxu0
        %v314 = vadd.f32 0.0, %v313
        %v315 = vpop.f32.mrb[0].mxu0
        %v316 = vadd.f32 0.0, %v315
        %v317 = vpop.f32.mrb[0].mxu0
        %v318 = vadd.f32 0.0, %v317
        %319 = vmatprep.mubr.bf16.mxu0 0
        %320 = vmatmul.mubr.bf16.gmra.mrb[0].mxu0 %v268
        %v321 = vpop.f32.mrb[0].mxu0
        %v322 = vadd.f32 0.0, %v321
        %v323 = vpop.f32.mrb[0].mxu0
        %v324 = vadd.f32 0.0, %v323
        %v325 = vpop.f32.mrb[0].mxu0
        %v326 = vadd.f32 0.0, %v325
        %v327 = vpop.f32.mrb[0].mxu0
        %v328 = vadd.f32 0.0, %v327
        %329 = vdwg.mxu0
        %v330 = vld [vmem:[%s2] sm:$0xff]
        %v331 = vld [vmem:[%s2 + $0x8] sm:$0xff]
        %v332 = vld [vmem:[%s2 + $0x10] sm:$0xff]
        %v333 = vld [vmem:[%s2 + $0x18] sm:$0xff]
        %v334 = vmul.f32 %v312, %v312
        %v335 = vmul.f32 %v314, %v314
        %v336 = vmul.f32 %v316, %v316
        %v337 = vmul.f32 %v318, %v318
        %v338 = vmul.f32 %v322, %v322
        %v339 = vmul.f32 %v324, %v324
        %v340 = vmul.f32 %v326, %v326
        %v341 = vmul.f32 %v328, %v328
        %vm342 = vcmask 261120
        %v344 = vsel %vm342, %v330, 0
        %v347 = vsel %vm342, %v331, 0
        %v350 = vsel %vm342, %v332, 0
        %v353 = vsel %vm342, %v333, 0
        %355 = vmatprep.subr.mxu0 %v335
        %356 = vmatpush1.msra.mxu0 %v334
        %357 = vmatprep.subr.mxu0 %v337
        %358 = vmatpush1.msra.mxu0 %v336
        %359 = vmatprep.subr.mxu0 %v339
        %360 = vmatpush1.msra.mxu0 %v338
        %361 = vmatprep.subr.mxu0 %v341
        %362 = vmatpush1.msra.mxu0 %v340
        %363 = vmatprep.subr.mxu0 0.0
        %364 = vmatpush1.msra.mxu0 0.0
        %365 = vmatprep.subr.mxu0 0.0
        %366 = vmatpush1.msra.mxu0 0.0
        %367 = vmatprep.subr.mxu0 0.0
        %368 = vmatpush1.msra.mxu0 0.0
        %369 = vmatprep.subr.mxu0 0.0
        %370 = vmatpush1.msra.mxu0 0.0
        %371 = vmatprep.subr.mxu0 0.0
        %372 = vmatpush1.msra.mxu0 0.0
        %373 = vmatprep.subr.mxu0 0.0
        %374 = vmatpush1.msra.mxu0 0.0
        %375 = vmatprep.subr.mxu0 0.0
        %376 = vmatpush1.msra.mxu0 0.0
        %377 = vmatprep.subr.mxu0 0.0
        %378 = vmatpush1.msra.mxu0 0.0
        %379 = vmatprep.subr.mxu0 0.0
        %380 = vmatpush1.msra.mxu0 0.0
        %381 = vmatprep.subr.mxu0 0.0
        %382 = vmatpush1.msra.mxu0 0.0
        %383 = vmatprep.subr.mxu0 0.0
        %384 = vmatpush1.msra.mxu0 0.0
        %385 = vmatprep.subr.mxu0 0.0
        %386 = vmatpush1.msra.mxu0 0.0
        %387 = vmatprep.subr.mxu0 0.0
        %388 = vmatpush1.msra.mxu0 0.0
        %389 = vmatprep.subr.mxu0 0.0
        %390 = vmatpush1.msra.mxu0 0.0
        %391 = vmatprep.subr.mxu0 0.0
        %392 = vmatpush1.msra.mxu0 0.0
        %393 = vmatprep.subr.mxu0 0.0
        %394 = vmatpush1.msra.mxu0 0.0
        %395 = vmatprep.subr.mxu0 0.0
        %396 = vmatpush1.msra.mxu0 0.0
        %397 = vmatprep.subr.mxu0 0.0
        %398 = vmatpush1.msra.mxu0 0.0
        %399 = vmatprep.subr.mxu0 0.0
        %400 = vmatpush1.msra.mxu0 0.0
        %401 = vmatprep.subr.mxu0 0.0
        %402 = vmatpush1.msra.mxu0 0.0
        %403 = vmatprep.subr.mxu0 0.0
        %404 = vmatpush1.msra.mxu0 0.0
        %405 = vmatprep.subr.mxu0 0.0
        %406 = vmatpush1.msra.mxu0 0.0
        %407 = vmatprep.subr.mxu0 0.0
        %408 = vmatpush1.msra.mxu0 0.0
        %409 = vmatprep.subr.mxu0 0.0
        %410 = vmatpush1.msra.mxu0 0.0
        %411 = vmatprep.subr.mxu0 0.0
        %412 = vmatpush1.msra.mxu0 0.0
        %413 = vmatprep.subr.mxu0 0.0
        %414 = vmatpush1.msra.mxu0 0.0
        %415 = vmatprep.subr.mxu0 0.0
        %416 = vmatpush1.msra.mxu0 0.0
        %417 = vmatprep.subr.mxu0 0.0
        %418 = vmatpush1.msra.mxu0 0.0
        %419 = vmatprep.mubr.f32.mxu0 0.0
        %420 = vmatmul.mubr.f32.gmra.mrb[0].mxu0 %v344
        %v421 = vpop.f32.mrb[0].mxu0
        %v422 = vadd.f32 0.0, %v421
        %v423 = vpop.f32.mrb[0].mxu0
        %v424 = vadd.f32 0.0, %v423
        %425 = vmatprep.mubr.f32.mxu0 0.0
        %426 = vmatmul.mubr.f32.gmra.mrb[0].mxu0 %v347
        %v427 = vpop.f32.mrb[0].mxu0
        %v428 = vadd.f32 0.0, %v427
        %v429 = vpop.f32.mrb[0].mxu0
        %v430 = vadd.f32 0.0, %v429
        %431 = vmatprep.mubr.f32.mxu0 0.0
        %432 = vmatmul.mubr.f32.gmra.mrb[0].mxu0 %v350
        %v433 = vpop.f32.mrb[0].mxu0
        %v434 = vadd.f32 0.0, %v433
        %v435 = vpop.f32.mrb[0].mxu0
        %v436 = vadd.f32 0.0, %v435
        %437 = vmatprep.mubr.f32.mxu0 0.0
        %438 = vmatmul.mubr.f32.gmra.mrb[0].mxu0 %v353
        %v439 = vpop.f32.mrb[0].mxu0
        %v440 = vadd.f32 0.0, %v439
        %v441 = vpop.f32.mrb[0].mxu0
        %v442 = vadd.f32 0.0, %v441
        %443 = vdwg.mxu0
        %v444 = vrsqrt.pop %v422
        %v445 = vmul.f32 %v422, %v444
        %vm446 = vcmp.eq.f32.partialorder %v422, inf
        %v447 = vsel %vm446, %v422, %v445
        %vm448 = vcmp.eq.f32.partialorder %v422, 0.0
        %v449 = vand.u32 %v422, 2147483648
        %v450 = vsel %vm448, %v449, %v447
        %v451 = vrsqrt.pop %v424
        %v452 = vmul.f32 %v424, %v451
        %vm453 = vcmp.eq.f32.partialorder %v424, inf
        %v454 = vsel %vm453, %v424, %v452
        %vm455 = vcmp.eq.f32.partialorder %v424, 0.0
        %v456 = vand.u32 %v424, 2147483648
        %v457 = vsel %vm455, %v456, %v454
        %v458 = vrsqrt.pop %v428
        %v459 = vmul.f32 %v428, %v458
        %vm460 = vcmp.eq.f32.partialorder %v428, inf
        %v461 = vsel %vm460, %v428, %v459
        %vm462 = vcmp.eq.f32.partialorder %v428, 0.0
        %v463 = vand.u32 %v428, 2147483648
        %v464 = vsel %vm462, %v463, %v461
        %v465 = vrsqrt.pop %v430
        %v466 = vmul.f32 %v430, %v465
        %vm467 = vcmp.eq.f32.partialorder %v430, inf
        %v468 = vsel %vm467, %v430, %v466
        %vm469 = vcmp.eq.f32.partialorder %v430, 0.0
        %v470 = vand.u32 %v430, 2147483648
        %v471 = vsel %vm469, %v470, %v468
        %v472 = vrsqrt.pop %v434
        %v473 = vmul.f32 %v434, %v472
        %vm474 = vcmp.eq.f32.partialorder %v434, inf
        %v475 = vsel %vm474, %v434, %v473
        %vm476 = vcmp.eq.f32.partialorder %v434, 0.0
        %v477 = vand.u32 %v434, 2147483648
        %v478 = vsel %vm476, %v477, %v475
        %v479 = vrsqrt.pop %v436
        %v480 = vmul.f32 %v436, %v479
        %vm481 = vcmp.eq.f32.partialorder %v436, inf
        %v482 = vsel %vm481, %v436, %v480
        %vm483 = vcmp.eq.f32.partialorder %v436, 0.0
        %v484 = vand.u32 %v436, 2147483648
        %v485 = vsel %vm483, %v484, %v482
        %v486 = vrsqrt.pop %v440
        %v487 = vmul.f32 %v440, %v486
        %vm488 = vcmp.eq.f32.partialorder %v440, inf
        %v489 = vsel %vm488, %v440, %v487
        %vm490 = vcmp.eq.f32.partialorder %v440, 0.0
        %v491 = vand.u32 %v440, 2147483648
        %v492 = vsel %vm490, %v491, %v489
        %v493 = vrsqrt.pop %v442
        %v494 = vmul.f32 %v442, %v493
        %vm495 = vcmp.eq.f32.partialorder %v442, inf
        %v496 = vsel %vm495, %v442, %v494
        %vm497 = vcmp.eq.f32.partialorder %v442, 0.0
        %v498 = vand.u32 %v442, 2147483648
        %v499 = vsel %vm497, %v498, %v496
        %v500 = vadd.f32 %v422, 1.0
        %v501 = vadd.f32 %v424, 1.0
        %v502 = vadd.f32 %v428, 1.0
        %v503 = vadd.f32 %v430, 1.0
        %v504 = vadd.f32 %v434, 1.0
        %v505 = vadd.f32 %v436, 1.0
        %v506 = vadd.f32 %v440, 1.0
        %v507 = vadd.f32 %v442, 1.0
        %v508 = vrcp.pop %v500
        %v509 = vrcp.pop %v501
        %v510 = vrcp.pop %v502
        %v511 = vrcp.pop %v503
        %v512 = vrcp.pop %v504
        %v513 = vrcp.pop %v505
        %v514 = vrcp.pop %v506
        %v515 = vrcp.pop %v507
        %v516 = vmul.f32 %v450, %v508
        %v517 = vmul.f32 %v457, %v509
        %v518 = vmul.f32 %v464, %v510
        %v519 = vmul.f32 %v471, %v511
        %v520 = vmul.f32 %v478, %v512
        %v521 = vmul.f32 %v485, %v513
        %v522 = vmul.f32 %v492, %v514
        %v523 = vmul.f32 %v499, %v515
        %v524 = vmul.f32 %v312, %v516
        %v525 = vmul.f32 %v314, %v517
        %v526 = vmul.f32 %v316, %v518
        %v527 = vmul.f32 %v318, %v519
        %v528 = vmul.f32 %v322, %v520
        %v529 = vmul.f32 %v324, %v521
        %v530 = vmul.f32 %v326, %v522
        %v531 = vmul.f32 %v328, %v523
        %532 = vst [vmem:[%s215] sm:$0xff] %v524
        %533 = vst [vmem:[%s215 + $0x8] sm:$0xff] %v525
        %534 = vst [vmem:[%s215 + $0x10] sm:$0xff] %v526
        %535 = vst [vmem:[%s215 + $0x18] sm:$0xff] %v527
        %536 = vst [vmem:[%s215 + $0x20] sm:$0xff] %v528
        %537 = vst [vmem:[%s215 + $0x28] sm:$0xff] %v529
        %538 = vst [vmem:[%s215 + $0x30] sm:$0xff] %v530
        %539 = vst [vmem:[%s215 + $0x38] sm:$0xff] %v531
        %s540 = sand.u32 %s90, 1
        %s541 = sand.u32 %s90, 1
        %s542 = smul.addr %s541, 64
        %s543 = scalar_lea.vmem [#allocation3], %s542
        // Predicated region
        $region71: #{local_fedcaps_forward.3} parent=65 // pred_check
          %p544 = pneg %p100
        $region72: #{local_fedcaps_forward.3} parent=65 // pred_check_branch
          %546 = sbr.rel (%p544) target = $region74
        $region73: #{local_fedcaps_forward.3} parent=65 // pred_region
          %s547 = smul.u32 2, %s14
          %s548 = smul.addr %s547, 8
          %s549 = scalar_lea.vmem %s3, %s548
          // Predicated region
          $region75: #{local_fedcaps_forward.3} parent=73 // pred_check
            _
          $region76: #{local_fedcaps_forward.3} parent=73 // pred_check_branch
            %551 = sbr.rel (0) target = $region78
          $region77: #{local_fedcaps_forward.3} parent=73 // pred_region
            // Predicated region
            $region79: #{local_fedcaps_forward.3} parent=77 // pred_check
              _
            $region80: #{local_fedcaps_forward.3} parent=77 // pred_check_branch
              %553 = sbr.rel (0) target = $region82
            $region81: #{local_fedcaps_forward.3} parent=77 // pred_region
              loop: start=0, step=1, limit=1
              $region83: #{local_fedcaps_forward.3} parent=81 // loop_pre_header
                _
              $region84: #{local_fedcaps_forward.3} parent=81 // loop_header
                %s555 = sphi 0, %s559
                %p556 = scmp.ge.s32.totalorder %s555, 1
                %s560 = sphi %s543, %s543
                %s561 = sphi %s549, %s549
              $region85: #{local_fedcaps_forward.3} parent=81 // loop_header_branch
                %558 = sbr.rel (%p556) target = $region89
              $region86: #{local_fedcaps_forward.3} parent=81 // loop_body
                %v562 = vld [vmem:[%s560] sm:$0xff]
                %563 = vst [vmem:[%s561] sm:$0xff] %v562
                %v564 = vld [vmem:[%s560 + $0x8] sm:$0xff]
                %565 = vst [vmem:[%s561 + $0x8] sm:$0xff] %v564
                %v566 = vld [vmem:[%s560 + $0x10] sm:$0xff]
                %567 = vst [vmem:[%s561 + $0x20] sm:$0xff] %v566
                %v568 = vld [vmem:[%s560 + $0x18] sm:$0xff]
                %569 = vst [vmem:[%s561 + $0x28] sm:$0xff] %v568
                %v570 = vld [vmem:[%s560 + $0x20] sm:$0xff]
                %571 = vst [vmem:[%s561 + $0x40] sm:$0xff] %v570
                %v572 = vld [vmem:[%s560 + $0x28] sm:$0xff]
                %573 = vst [vmem:[%s561 + $0x48] sm:$0xff] %v572
                %v574 = vld [vmem:[%s560 + $0x30] sm:$0xff]
                %575 = vst [vmem:[%s561 + $0x60] sm:$0xff] %v574
                %v576 = vld [vmem:[%s560 + $0x38] sm:$0xff]
                %577 = vst [vmem:[%s561 + $0x68] sm:$0xff] %v576
              $region87: #{local_fedcaps_forward.3} parent=81 // loop_footer
                %s559 = sadd.s32 1, %s555
              $region88: #{local_fedcaps_forward.3} parent=81 // loop_footer_branch
                %554 = sbr.rel target = $region84
              $region89: #{local_fedcaps_forward.3} parent=81 // loop_exit
                _
            $region82: #{local_fedcaps_forward.3} parent=77 // pred_fallthru
              _
            // Predicated region
            $region90: #{local_fedcaps_forward.3} parent=77 // pred_check
              _
            $region91: #{local_fedcaps_forward.3} parent=77 // pred_check_branch
              %579 = sbr.rel target = $region93
            $region92: #{local_fedcaps_forward.3} parent=77 // pred_region
              _
            $region93: #{local_fedcaps_forward.3} parent=77 // pred_fallthru
              _
          $region78: #{local_fedcaps_forward.3} parent=73 // pred_fallthru
            _
          %580 = vnop
        $region74: #{local_fedcaps_forward.3} parent=65 // pred_fallthru
          _
      $region66: #{local_fedcaps_forward.3} parent=5 // pred_fallthru
        _
      %p581 = scmp.le.s32.totalorder 2, %s9
      // Predicated region
      $region94: #{local_fedcaps_forward.3} parent=5 // pred_check
        %p582 = pneg %p581
      $region95: #{local_fedcaps_forward.3} parent=5 // pred_check_branch
        %584 = sbr.rel (%p582) target = $region97
      $region96: #{local_fedcaps_forward.3} parent=5 // pred_region
        %s585 = ssub.s32 %s9, 2
        // Predicated region
        $region98: #{local_fedcaps_forward.3} parent=96 // pred_check
          %p586 = pneg %p106
        $region99: #{local_fedcaps_forward.3} parent=96 // pred_check_branch
          %588 = sbr.rel (%p586) target = $region101
        $region100: #{local_fedcaps_forward.3} parent=96 // pred_region
          %s589 = sand.u32 %s91, 1
          %s590 = sand.u32 %s91, 1
          %s591 = smul.addr %s590, 64
          %s592 = scalar_lea.vmem [#allocation3], %s591
        $region101: #{local_fedcaps_forward.3} parent=96 // pred_fallthru
          _
      $region97: #{local_fedcaps_forward.3} parent=5 // pred_fallthru
        _
    $region6: #{local_fedcaps_forward.3} parent=1 // loop_footer
      %s13 = sadd.s32 1, %s9
    $region7: #{local_fedcaps_forward.3} parent=1 // loop_footer_branch
      %8 = sbr.rel target = $region3
    $region8: #{local_fedcaps_forward.3} parent=1 // loop_exit
      _

</llo_original>
